<compile_context>
chip_gen: v7x
topology: tpu7x:2x2x1
jax: 0.10.0
libtpu: 0.0.40
codegen_flags: <defaults>
</compile_context>

<pallas_src>
import functools

import jax
import jax.numpy as jnp
from jax import lax
from jax.experimental import pallas as pl
from jax.experimental.pallas import tpu as pltpu


def _round_up(x, m):
    return ((x + m - 1) // m) * m


def _sublane_pack(dtype):
    # Sublane packing: 8 rows for 4-byte, 16 for 2-byte, 32 for 1-byte dtypes.
    return max(8, 32 // jnp.dtype(dtype).itemsize)


def _make_kernel(*, beta, alpha, has_input, separate_acc, K, tk, rem_k,
                 compute_dtype):
    """Builds the kernel body. Grid = (M/tm, N/tn, K/tk); K last (arbitrary)."""
    beta = float(beta)
    alpha = float(alpha)

    def kernel(*refs):
        if separate_acc:
            refs, acc_ref = refs[:-1], refs[-1]
        if has_input:
            inp_ref, a_ref, b_ref, o_ref = refs
        else:
            a_ref, b_ref, o_ref = refs
            inp_ref = None
        acc = acc_ref if separate_acc else o_ref  # o_ref is f32 in that case

        k = pl.program_id(2)

        a = a_ref[...]
        b = b_ref[...]
        if rem_k:
            # Mask the ragged K tail in-kernel (no K-padded HBM copies).
            # jnp.where never touches the masked (possibly NaN) garbage.
            valid = jnp.int32(K) - k * jnp.int32(tk)
            col = lax.broadcasted_iota(jnp.int32, a.shape, 1)
            a = jnp.where(col < valid, a, jnp.zeros_like(a))
            row = lax.broadcasted_iota(jnp.int32, b.shape, 0)
            b = jnp.where(row < valid, b, jnp.zeros_like(b))
        if compute_dtype is not None:
            a = a.astype(compute_dtype)
            b = b.astype(compute_dtype)

        prod = jnp.dot(a, b, preferred_element_type=jnp.float32)

        @pl.when(k == 0)
        def _():
            acc[...] = prod.astype(acc.dtype)

        @pl.when(k != 0)
        def _():
            acc[...] += prod.astype(acc.dtype)

        # Epilogue only where needed (all conditions are trace-time static).
        if separate_acc or has_input or alpha != 1.0:
            @pl.when(k == pl.num_programs(2) - 1)
            def _():
                res = acc[...].astype(jnp.float32)
                if alpha != 1.0:
                    res = res * jnp.float32(alpha)
                if has_input:
                    inp = inp_ref[...].astype(jnp.float32)
                    if beta != 1.0:
                        inp = inp * jnp.float32(beta)
                    res = res + inp  # broadcasts bias-like inputs
                o_ref[...] = res.astype(o_ref.dtype)

    return kernel


def _input_spec(inp, M, N, tm, tn):
    """Return (2-D view of input, BlockSpec) without materializing (M, N)."""
    if inp.ndim == 0:
        inp2 = inp.reshape(1, 1)
    elif inp.ndim == 1:
        inp2 = inp.reshape(1, -1)
    elif inp.ndim == 2:
        inp2 = inp
    else:
        raise ValueError("torch.addmm input must be broadcastable to (M, N)")

    r, c = inp2.shape
    if r not in (1, M) or c not in (1, N):
        raise ValueError("input is not broadcastable to (M, N)")

    if r == 1 and c == 1:
        spec = pl.BlockSpec((1, 1), lambda i, j, k: (0, 0))
    elif r == 1:
        spec = pl.BlockSpec((1, tn), lambda i, j, k: (0, j))
    elif c == 1:
        spec = pl.BlockSpec((tm, 1), lambda i, j, k: (i, 0))
    else:
        spec = pl.BlockSpec((tm, tn), lambda i, j, k: (i, j))
    return inp2, spec


@functools.partial(
    jax.jit,
    static_argnames=("beta", "alpha", "tm", "tn", "tk", "compute_dtype"),
)
def addmm(input_, mat1, mat2, beta=1.0, alpha=1.0, *,
          tm=512, tn=512, tk=None, compute_dtype=None):
    """Pallas equivalent of torch.addmm(input, mat1, mat2, beta=beta, alpha=alpha)."""
    M, K = mat1.shape
    K2, N = mat2.shape
    if K != K2:
        raise ValueError("inner dims must match")

    beta = float(beta)
    alpha = float(alpha)
    # torch.addmm: beta == 0 ignores `input` (no NaN/Inf propagation) -> drop
    # the operand entirely (saves a whole DMA stream + epilogue select).
    has_input = beta != 0.0

    out_dtype = jnp.result_type(input_.dtype, mat1.dtype, mat2.dtype)

    if tk is None:
        cd = compute_dtype if compute_dtype is not None else \
            jnp.promote_types(mat1.dtype, mat2.dtype)
        tk = 1024 if jnp.dtype(cd).itemsize <= 2 else 512

    pack = max(_sublane_pack(mat1.dtype), _sublane_pack(out_dtype))
    if has_input:
        pack = max(pack, _sublane_pack(input_.dtype))

    # Clamp tiles for small problems, keeping alignment (pack / 128).
    tm_e = _round_up(min(tm, _round_up(M, pack)), pack)
    tn_e = min(tn, _round_up(N, 128))
    tk_e = min(tk, _round_up(K, 128))

    # v7x has 2 TensorCores: keep >= 2 parallel output blocks when possible.
    if pl.cdiv(M, tm_e) * pl.cdiv(N, tn_e) == 1:
        if _round_up(N, 128) >= 256:
            tn_e = _round_up(_round_up(N, 128) // 2, 128)
        elif _round_up(M, pack) >= 2 * pack:
            tm_e = _round_up(_round_up(M, pack) // 2, pack)

    grid = (pl.cdiv(M, tm_e), pl.cdiv(N, tn_e), pl.cdiv(K, tk_e))
    rem_k = K % tk_e
    separate_acc = jnp.dtype(out_dtype) != jnp.dtype(jnp.float32)

    a_spec = pl.BlockSpec((tm_e, tk_e), lambda i, j, k: (i, k))
    b_spec = pl.BlockSpec((tk_e, tn_e), lambda i, j, k: (k, j))
    # Output tile resident across the K axis -> one writeback per (i, j).
    out_spec = pl.BlockSpec((tm_e, tn_e), lambda i, j, k: (i, j))

    args, in_specs = [], []
    inp2 = None
    if has_input:
        inp2, inp_spec = _input_spec(input_, M, N, tm_e, tn_e)
        args.append(inp2)
        in_specs.append(inp_spec)
    args += [mat1, mat2]
    in_specs += [a_spec, b_spec]

    scratch_shapes = []
    if separate_acc:
        scratch_shapes.append(pltpu.VMEM((tm_e, tn_e), jnp.float32))

    kernel = _make_kernel(
        beta=beta, alpha=alpha, has_input=has_input, separate_acc=separate_acc,
        K=K, tk=tk_e, rem_k=rem_k, compute_dtype=compute_dtype)

    # VMEM budget (double-buffered ins/outs + accumulator), with headroom,
    # capped at 48 MiB so v7x (64 MiB physical VMEM) keeps compiler headroom.
    need = (2 * tm_e * tk_e * mat1.dtype.itemsize
            + 2 * tk_e * tn_e * mat2.dtype.itemsize
            + 2 * tm_e * tn_e * jnp.dtype(out_dtype).itemsize)
    if separate_acc:
        need += tm_e * tn_e * 4
    if has_input:
        rblk = 1 if inp2.shape[0] == 1 else tm_e
        cblk = 1 if inp2.shape[1] == 1 else tn_e
        need += 2 * rblk * cblk * inp2.dtype.itemsize
    vmem_limit = int(min(max(int(1.5 * need), 32 * 1024 * 1024),
                         48 * 1024 * 1024))

    cost = pl.CostEstimate(
        flops=2 * M * N * K,
        transcendentals=0,
        bytes_accessed=(
            mat1.size * mat1.dtype.itemsize
            + mat2.size * mat2.dtype.itemsize
            + (inp2.size * inp2.dtype.itemsize if has_input else 0)
            + M * N * jnp.dtype(out_dtype).itemsize),
    )

    # TODO(synk): for bf16-heavy v6e workloads, sweeping pipeline_mode=
    # pl.Buffered(3) on a_spec/b_spec and tk in {512,1024,2048} can hide the
    # extra DMA latency; left at the 2-deep default here.
    return pl.pallas_call(
        kernel,
        out_shape=jax.ShapeDtypeStruct((M, N), out_dtype),
        grid_spec=pltpu.PrefetchScalarGridSpec(
            num_scalar_prefetch=0,
            grid=grid,
            in_specs=in_specs,
            out_specs=out_spec,
            scratch_shapes=scratch_shapes,
        ),
        compiler_params=pltpu.CompilerParams(
            dimension_semantics=("parallel", "parallel", "arbitrary"),
            vmem_limit_bytes=vmem_limit,
        ),
        cost_estimate=cost,
    )(*args)


if __name__ == "__main__":
    key = jax.random.PRNGKey(0)
    k1, k2, k3, k4, k5 = jax.random.split(key, 5)

    # Test 1: small shapes consistent with AddMatmul.forward(input, mat1, mat2).
    M, K, N = 16, 32, 256
    input_ = jax.random.normal(k1, (M, N), dtype=jnp.float32)
    mat1 = jax.random.normal(k2, (M, K), dtype=jnp.float32)
    mat2 = jax.random.normal(k3, (K, N), dtype=jnp.float32)
    beta, alpha = 0.5, 2.0
    out = jax.block_until_ready(addmm(input_, mat1, mat2, beta=beta, alpha=alpha))
    ref = beta * input_ + alpha * (mat1 @ mat2)
    assert out.shape == (M, N)
    assert jnp.allclose(out, ref, atol=1e-4, rtol=1e-4), "test1 mismatch"

    # Test 2: ragged M/N/K, 1-D row bias, torch default beta=1, alpha=1.
    M2, K2, N2 = 50, 96, 200
    bias = jax.random.normal(k4, (N2,), dtype=jnp.float32)
    a2 = jax.random.normal(k5, (M2, K2), dtype=jnp.float32)
    b2 = jax.random.normal(k1, (K2, N2), dtype=jnp.float32)
    out2 = jax.block_until_ready(addmm(bias, a2, b2))
    ref2 = bias[None, :] + a2 @ b2
    assert out2.shape == (M2, N2)
    assert jnp.allclose(out2, ref2, atol=2e-3, rtol=2e-3), "test2 mismatch"

    # Test 3: beta == 0 ignores `input` (torch.addmm NaN semantics).
    nan_inp = jnp.full((M, N), jnp.nan, dtype=jnp.float32)
    out3 = jax.block_until_ready(addmm(nan_inp, mat1, mat2, beta=0.0, alpha=1.0))
    assert jnp.allclose(out3, mat1 @ mat2, atol=2e-3, rtol=2e-3), "test3 mismatch"

    print("KERNEL_OK")
</pallas_src>

<mosaic_0001>
module attributes {stable_mosaic.version = 11 : i64} {
  func.func @kernel(%arg0: i32, %arg1: i32, %arg2: i32, %arg3: memref<16x128xf32, #tpu.memory_space<vmem>>, %arg4: memref<16x128xf32, #tpu.memory_space<vmem>>, %arg5: memref<128x128xf32, #tpu.memory_space<vmem>>, %arg6: memref<16x128xf32, #tpu.memory_space<vmem>>) attributes {dimension_semantics = [#tpu.dimension_semantics<parallel>, #tpu.dimension_semantics<parallel>, #tpu.dimension_semantics<arbitrary>], iteration_bounds = array<i64: 1, 2, 1>, scalar_prefetch = 0 : i64, scratch_operands = 0 : i64, tpu.core_type = #tpu.core_type<tc>, window_params = [{transform_indices = @transform_0, window_bounds = array<i64: 16, 128>}, {transform_indices = @transform_1, window_bounds = array<i64: 16, 128>}, {transform_indices = @transform_2, window_bounds = array<i64: 128, 128>}, {transform_indices = @transform_3, window_bounds = array<i64: 16, 128>}]} {
    %c0 = arith.constant 0 : index
    %c0_0 = arith.constant 0 : index
    %0 = vector.load %arg4[%c0, %c0_0] : memref<16x128xf32, #tpu.memory_space<vmem>>, vector<16x128xf32>
    %c0_1 = arith.constant 0 : index
    %c0_2 = arith.constant 0 : index
    %1 = vector.load %arg5[%c0_1, %c0_2] : memref<128x128xf32, #tpu.memory_space<vmem>>, vector<128x128xf32>
    %c128_i32 = arith.constant 128 : i32
    %2 = arith.muli %arg2, %c128_i32 : i32
    %c32_i32 = arith.constant 32 : i32
    %3 = arith.subi %c32_i32, %2 : i32
    %4 = tpu.iota {dimensions = array<i32: 1>} : vector<16x128xi32>
    %5 = vector.broadcast %3 : i32 to vector<16x128xi32>
    %6 = arith.cmpi slt, %4, %5 : vector<16x128xi32>
    %cst = arith.constant 0.000000e+00 : f32
    %7 = vector.broadcast %cst : f32 to vector<16x128xf32>
    %8 = arith.select %6, %0, %7 : vector<16x128xi1>, vector<16x128xf32>
    %9 = tpu.iota {dimensions = array<i32: 0>} : vector<128x128xi32>
    %10 = vector.broadcast %3 : i32 to vector<128x128xi32>
    %11 = arith.cmpi slt, %9, %10 : vector<128x128xi32>
    %cst_3 = arith.constant 0.000000e+00 : f32
    %12 = vector.broadcast %cst_3 : f32 to vector<128x128xf32>
    %13 = arith.select %11, %1, %12 : vector<128x128xi1>, vector<128x128xf32>
    %cst_4 = arith.constant dense<0.000000e+00> : vector<16x128xf32>
    %14 = tpu.matmul %8, %13, %cst_4 {dimension_numbers = #tpu.dot_dimension_numbers<[1], [0], [0], [1], [0, 0, 1, 1], [], []>} : vector<16x128xf32>, vector<128x128xf32>, vector<16x128xf32> -> vector<16x128xf32>
    %c0_i32 = arith.constant 0 : i32
    %15 = arith.cmpi eq, %arg2, %c0_i32 : i32
    %16 = arith.extui %15 : i1 to i32
    %c0_i32_5 = arith.constant 0 : i32
    %17 = arith.cmpi ne, %16, %c0_i32_5 : i32
    scf.if %17 {
      %c0_10 = arith.constant 0 : index
      %c0_11 = arith.constant 0 : index
      %24 = vector.load %arg6[%c0_10, %c0_11] : memref<16x128xf32, #tpu.memory_space<vmem>>, vector<16x128xf32>
      tpu.vector_store %arg6[%c0_10, %c0_11], %14 {strides = array<i32>} : memref<16x128xf32, #tpu.memory_space<vmem>>, vector<16x128xf32>,
    } else {
    }
    %c0_i32_6 = arith.constant 0 : i32
    %18 = arith.cmpi ne, %arg2, %c0_i32_6 : i32
    %19 = arith.extui %18 : i1 to i32
    %c0_i32_7 = arith.constant 0 : i32
    %20 = arith.cmpi ne, %19, %c0_i32_7 : i32
    scf.if %20 {
      %c0_10 = arith.constant 0 : index
      %c0_11 = arith.constant 0 : index
      %24 = vector.load %arg6[%c0_10, %c0_11] : memref<16x128xf32, #tpu.memory_space<vmem>>, vector<16x128xf32>
      %25 = arith.addf %24, %14 : vector<16x128xf32>
      %c0_12 = arith.constant 0 : index
      %c0_13 = arith.constant 0 : index
      %26 = vector.load %arg6[%c0_12, %c0_13] : memref<16x128xf32, #tpu.memory_space<vmem>>, vector<16x128xf32>
      tpu.vector_store %arg6[%c0_12, %c0_13], %25 {strides = array<i32>} : memref<16x128xf32, #tpu.memory_space<vmem>>, vector<16x128xf32>,
    } else {
    }
    %c0_i32_8 = arith.constant 0 : i32
    %21 = arith.cmpi eq, %arg2, %c0_i32_8 : i32
    %22 = arith.extui %21 : i1 to i32
    %c0_i32_9 = arith.constant 0 : i32
    %23 = arith.cmpi ne, %22, %c0_i32_9 : i32
    scf.if %23 {
      %c0_10 = arith.constant 0 : index
      %c0_11 = arith.constant 0 : index
      %24 = vector.load %arg6[%c0_10, %c0_11] : memref<16x128xf32, #tpu.memory_space<vmem>>, vector<16x128xf32>
      %cst_12 = arith.constant 2.000000e+00 : f32
      %25 = vector.broadcast %cst_12 : f32 to vector<16x128xf32>
      %26 = arith.mulf %24, %25 : vector<16x128xf32>
      %c0_13 = arith.constant 0 : index
      %c0_14 = arith.constant 0 : index
      %27 = vector.load %arg3[%c0_13, %c0_14] : memref<16x128xf32, #tpu.memory_space<vmem>>, vector<16x128xf32>
      %cst_15 = arith.constant 5.000000e-01 : f32
      %28 = vector.broadcast %cst_15 : f32 to vector<16x128xf32>
      %29 = arith.mulf %27, %28 : vector<16x128xf32>
      %30 = arith.addf %26, %29 : vector<16x128xf32>
      %c0_16 = arith.constant 0 : index
      %c0_17 = arith.constant 0 : index
      %31 = vector.load %arg6[%c0_16, %c0_17] : memref<16x128xf32, #tpu.memory_space<vmem>>, vector<16x128xf32>
      tpu.vector_store %arg6[%c0_16, %c0_17], %30 {strides = array<i32>} : memref<16x128xf32, #tpu.memory_space<vmem>>, vector<16x128xf32>,
    } else {
    }
    return
  }
  func.func @transform_0(%arg0: i32, %arg1: i32, %arg2: i32) -> (i32, i32) {
    %c0_i32 = arith.constant 0 : i32
    return %arg0, %arg1 : i32, i32
  }
  func.func @transform_1(%arg0: i32, %arg1: i32, %arg2: i32) -> (i32, i32) {
    %c0_i32 = arith.constant 0 : i32
    return %arg0, %arg2 : i32, i32
  }
  func.func @transform_2(%arg0: i32, %arg1: i32, %arg2: i32) -> (i32, i32) {
    %c0_i32 = arith.constant 0 : i32
    return %arg2, %arg1 : i32, i32
  }
  func.func @transform_3(%arg0: i32, %arg1: i32, %arg2: i32) -> (i32, i32) {
    %c0_i32 = arith.constant 0 : i32
    return %arg0, %arg1 : i32, i32
  }
}

</mosaic_0001>

<llo_original>
// kernel: addmm.1
$region0: #{addmm.1}
  #allocation0 [shape = 'u32[]', space=smem, size = 0x4, offset = 0x4, fixed_abs, tag = 'smem constant byte address 0x4 - core index']
  #allocation1 [shape = 'u32[144,128]{1,0:T(1,128)}', space=vmem, size = 0x12000, scoped, tag = 'internal scratch']
  %s0 = inlined_call_operand.hbm [shape: f32[16,256], index: 0, kind: input, shape index: {}]
  %s1 = inlined_call_operand.hbm [shape: f32[16,32], index: 1, kind: input, shape index: {}]
  %s2 = inlined_call_operand.hbm [shape: f32[32,256], index: 2, kind: input, shape index: {}]
  %s3 = inlined_call_operand.hbm [shape: f32[16,256], index: 3, kind: output, shape index: {}]
  %s4 = sld [smem:[#allocation0]]
  $region69: #{addmm.1} parent=0
    _
  %s6 = ssub.s32 1, %s4
  %s7 = scalar_select 0, %s6, %s4
  $region1: #{addmm.1} parent=0
    #allocation2 [shape = 'u8[16384]{0}', space=vmem, size = 0x4000, scoped, tag = 'input window, operand 0']
    #allocation3 [shape = 's32[2]{0}', space=sflag, size = 0x8, scoped, tag = 'scoped memory for addmm.1']
    #allocation4 [shape = 's32[2]{0}', space=sflag, size = 0x8, scoped, tag = 'scoped memory for addmm.1']
    #allocation5 [shape = 'u8[8192]{0}', space=vmem, size = 0x2000, scoped, tag = 'input window, operand 1, single buffered']
    #allocation6 [shape = 's32[1]{0}', space=sflag, size = 0x4, scoped, tag = 'scoped memory for addmm.1']
    #allocation7 [shape = 'u8[131072]{0}', space=vmem, size = 0x20000, scoped, tag = 'input window, operand 2']
    #allocation8 [shape = 'u8[16384]{0}', space=vmem, size = 0x4000, scoped, tag = 'output window, operand 0']
    %8 = vsyncpa [#allocation3], 0
    %s9 = scalar_lea.sflag [#allocation3], 1
    %10 = vsyncpa %s9, 0
    %11 = vsyncpa [#allocation6], 0
    %12 = vsyncpa [#allocation4], 0
    %s13 = scalar_lea.sflag [#allocation4], 1
    %14 = vsyncpa %s13, 0
    loop: start=0, step=1, limit=4
    $region2: #{addmm.1} parent=1 // loop_pre_header
      _
    $region3: #{addmm.1} parent=1 // loop_header
      %s16 = sphi 0, %s20
      %p17 = scmp.ge.s32.totalorder %s16, 4
      %s23 = sphi 0, %s42
      %s24 = sphi 0, %s38
      %s25 = sphi 0, %s34
      %s26 = sphi 0, %s23
      %s27 = sphi 0, %s24
      %s28 = sphi 0, %s25
      %s29 = sphi 0, %s26
      %s30 = sphi 0, %s27
      %s31 = sphi 0, %s28
      %s47 = sphi 0, %s49
      %s50 = sphi 0, %s47
      %s51 = sphi 0, %s50
      %s67 = sphi 0, %s51
      %s75 = sphi 0, %s77
      %s78 = sphi 0, %s75
      %s79 = sphi 0, %s78
      %s95 = sphi 0, %s79
      %s103 = sphi 0, %s105
      %s106 = sphi 0, %s103
      %s107 = sphi 0, %s106
      %s123 = sphi 0, %s107
      %s131 = sphi 0, %s133
      %s134 = sphi 0, %s131
      %s135 = sphi 0, %s134
      %s151 = sphi 0, %s135
    $region4: #{addmm.1} parent=1 // loop_header_branch
      %19 = sbr.rel (%p17) target = $region8
    $region5: #{addmm.1} parent=1 // loop_body
      %s21 = ssub.s32 %s16, 1
      %s22 = ssub.s32 %s16, 2
      %s32 = sadd.s32 1, %s25
      %p33 = scmp.ge.s32.totalorder %s32, 1
      %s34 = scalar_select %p33, 0, %s32
      %s35 = sadd.s32 1, %s24
      %s36 = scalar_select %p33, %s35, %s24
      %p37 = scmp.ge.s32.totalorder %s36, 2
      %s38 = scalar_select %p37, 0, %s36
      %s39 = sadd.s32 1, %s23
      %s40 = scalar_select %p37, %s39, %s23
      %p41 = scmp.ge.s32.totalorder %s40, 1
      %s42 = scalar_select %p41, 0, %s40
      %s43 = ssub.s32 %s23, %s42
      %s44 = ssub.s32 %s24, %s38
      %s45 = sor.u32 %s43, %s44
      %p46 = scmp.eq.s32.totalorder %s45, 0
      %s48 = sadd.s32 %s47, 1
      %s49 = scalar_select %p46, %s47, %s48
      %p52 = pneg %p46
      %p53 = scmp.eq.s32.totalorder %s16, 1
      %p54 = por %p52, %p53
      %p55 = scmp.ne.s32.totalorder %s47, %s50
      %p56 = scmp.eq.s32.totalorder %s16, 0
      %p57 = por %p55, %p56
      %p58 = scmp.ne.s32.totalorder %s47, %s50
      %p59 = scmp.eq.s32.totalorder %s21, 1
      %p60 = por %p58, %p59
      %p61 = scmp.ne.s32.totalorder %s50, %s51
      %p62 = scmp.eq.s32.totalorder %s21, 0
      %p63 = por %p61, %p62
      %p64 = scmp.ne.s32.totalorder %s50, %s51
      %p65 = scmp.eq.s32.totalorder %s22, 1
      %p66 = por %p64, %p65
      %p68 = scmp.ne.s32.totalorder %s51, %s67
      %p69 = scmp.eq.s32.totalorder %s22, 0
      %p70 = por %p68, %p69
      %s71 = ssub.s32 %s23, %s42
      %s72 = ssub.s32 %s25, %s34
      %s73 = sor.u32 %s71, %s72
      %p74 = scmp.eq.s32.totalorder %s73, 0
      %s76 = sadd.s32 %s75, 1
      %s77 = scalar_select %p74, %s75, %s76
      %p80 = pneg %p74
      %p81 = scmp.eq.s32.totalorder %s16, 1
      %p82 = por %p80, %p81
      %p83 = scmp.ne.s32.totalorder %s75, %s78
      %p84 = scmp.eq.s32.totalorder %s16, 0
      %p85 = por %p83, %p84
      %p86 = scmp.ne.s32.totalorder %s75, %s78
      %p87 = scmp.eq.s32.totalorder %s21, 1
      %p88 = por %p86, %p87
      %p89 = scmp.ne.s32.totalorder %s78, %s79
      %p90 = scmp.eq.s32.totalorder %s21, 0
      %p91 = por %p89, %p90
      %p92 = scmp.ne.s32.totalorder %s78, %s79
      %p93 = scmp.eq.s32.totalorder %s22, 1
      %p94 = por %p92, %p93
      %p96 = scmp.ne.s32.totalorder %s79, %s95
      %p97 = scmp.eq.s32.totalorder %s22, 0
      %p98 = por %p96, %p97
      %s99 = ssub.s32 %s25, %s34
      %s100 = ssub.s32 %s24, %s38
      %s101 = sor.u32 %s99, %s100
      %p102 = scmp.eq.s32.totalorder %s101, 0
      %s104 = sadd.s32 %s103, 1
      %s105 = scalar_select %p102, %s103, %s104
      %p108 = pneg %p102
      %p109 = scmp.eq.s32.totalorder %s16, 1
      %p110 = por %p108, %p109
      %p111 = scmp.ne.s32.totalorder %s103, %s106
      %p112 = scmp.eq.s32.totalorder %s16, 0
      %p113 = por %p111, %p112
      %p114 = scmp.ne.s32.totalorder %s103, %s106
      %p115 = scmp.eq.s32.totalorder %s21, 1
      %p116 = por %p114, %p115
      %p117 = scmp.ne.s32.totalorder %s106, %s107
      %p118 = scmp.eq.s32.totalorder %s21, 0
      %p119 = por %p117, %p118
      %p120 = scmp.ne.s32.totalorder %s106, %s107
      %p121 = scmp.eq.s32.totalorder %s22, 1
      %p122 = por %p120, %p121
      %p124 = scmp.ne.s32.totalorder %s107, %s123
      %p125 = scmp.eq.s32.totalorder %s22, 0
      %p126 = por %p124, %p125
      %s127 = ssub.s32 %s23, %s42
      %s128 = ssub.s32 %s24, %s38
      %s129 = sor.u32 %s127, %s128
      %p130 = scmp.eq.s32.totalorder %s129, 0
      %s132 = sadd.s32 %s131, 1
      %s133 = scalar_select %p130, %s131, %s132
      %p136 = pneg %p130
      %p137 = scmp.eq.s32.totalorder %s16, 1
      %p138 = por %p136, %p137
      %p139 = scmp.ne.s32.totalorder %s131, %s134
      %p140 = scmp.eq.s32.totalorder %s16, 0
      %p141 = por %p139, %p140
      %p142 = scmp.ne.s32.totalorder %s131, %s134
      %p143 = scmp.eq.s32.totalorder %s21, 1
      %p144 = por %p142, %p143
      %p145 = scmp.ne.s32.totalorder %s134, %s135
      %p146 = scmp.eq.s32.totalorder %s21, 0
      %p147 = por %p145, %p146
      %p148 = scmp.ne.s32.totalorder %s134, %s135
      %p149 = scmp.eq.s32.totalorder %s22, 1
      %p150 = por %p148, %p149
      %p152 = scmp.ne.s32.totalorder %s135, %s151
      %p153 = scmp.eq.s32.totalorder %s22, 0
      %p154 = por %p152, %p153
      %p155 = scmp.le.s32.totalorder 1, %s16
      %p156 = scmp.lt.s32.totalorder %s16, 3
      %p157 = pnand %p155, %p156
      %p158 = pneg %p157
      // Predicated region
      $region9: #{addmm.1} parent=5 // pred_check
        _
      $region10: #{addmm.1} parent=5 // pred_check_branch
        %160 = sbr.rel (%p157) target = $region12
      $region11: #{addmm.1} parent=5 // pred_region
        %s161 = ssub.s32 %s16, 1
        // Predicated region
        $region13: #{addmm.1} parent=11 // pred_check
          %p162 = pneg %p91
        $region14: #{addmm.1} parent=11 // pred_check_branch
          %164 = sbr.rel (%p162) target = $region16
        $region15: #{addmm.1} parent=11 // pred_region
          %s165 = smul.u32 2, %s26
          %s167 = ssub.s32 256, 256
          %168 = vsyncadd [#allocation6], %s167
          %s169 = sadd.s32 %s28, %s165
          %s170 = smul.addr %s169, 128
          %s171 = scalar_lea.hbm %s1, %s170
          %s172 = sshll.u32 [#allocation5], 4
          %s173 = int_to_ptr.vmem [resolvable:$true] %s172
          %178 = dma.hbm_to_vmem [thread:$0]  %s171, 256, %s173, [#allocation6], 128, 128, 8
        $region16: #{addmm.1} parent=11 // pred_fallthru
          _
      $region12: #{addmm.1} parent=5 // pred_fallthru
        _
      %p179 = scmp.lt.s32.totalorder %s16, 2
      // Predicated region
      $region17: #{addmm.1} parent=5 // pred_check
        %p180 = pneg %p179
      $region18: #{addmm.1} parent=5 // pred_check_branch
        %182 = sbr.rel (%p180) target = $region20
      $region19: #{addmm.1} parent=5 // pred_region
        // Predicated region
        $region21: #{addmm.1} parent=19 // pred_check
          %p183 = pneg %p57
        $region22: #{addmm.1} parent=19 // pred_check_branch
          %185 = sbr.rel (%p183) target = $region24
        $region23: #{addmm.1} parent=19 // pred_region
          %s186 = sand.u32 %s16, 1
          %s187 = scalar_lea.sflag [#allocation3], %s186
          %s188 = sand.u32 %s47, 1
          %s189 = smul.addr %s188, 16
          %s190 = scalar_lea.vmem [#allocation2], %s189
          %s191 = smul.u32 2, %s23
          %s193 = ssub.s32 256, 256
          %194 = vsyncadd %s187, %s193
          %s195 = smul.addr %s191, 2
          %s196 = sadd.s32 %s24, %s195
          %s197 = smul.addr %s196, 128
          %s198 = scalar_lea.hbm %s0, %s197
          %s199 = sshll.u32 %s190, 4
          %s200 = int_to_ptr.vmem [resolvable:$true] %s199
          %205 = dma.hbm_to_vmem [thread:$0]  %s198, 256, %s200, %s187, 256, 128, 8
        $region24: #{addmm.1} parent=19 // pred_fallthru
          _
        // Predicated region
        $region25: #{addmm.1} parent=19 // pred_check
          %p206 = pneg %p113
        $region26: #{addmm.1} parent=19 // pred_check_branch
          %208 = sbr.rel (%p206) target = $region28
        $region27: #{addmm.1} parent=19 // pred_region
          %s209 = sand.u32 %s16, 1
          %s210 = scalar_lea.sflag [#allocation3], %s209
          %s211 = sand.u32 %s103, 1
          %s212 = smul.addr %s211, 128
          %s213 = scalar_lea.vmem [#allocation7], %s212
          %s214 = smul.u32 16, %s25
          %s215 = ssub.s32 4, %s214
          %s216 = smul.u32 128, %s215
          %s218 = ssub.s32 2048, %s216
          %219 = vsyncadd %s210, %s218
          %p220 = scmp.ne.s32.totalorder 0, %s216
          %s221 = smul.addr %s214, 2
          %s222 = sadd.s32 %s24, %s221
          %s223 = smul.addr %s222, 128
          %s224 = scalar_lea.hbm %s2, %s223
          %s225 = smul.u32 8, %s215
          %s226 = sshll.u32 %s213, 4
          %s227 = int_to_ptr.vmem [resolvable:$true] %s226
          %s228 = sshll.u32 %s225, 4
          %232 = dma.hbm_to_vmem [thread:$0]  (%p220), %s224, %s228, %s227, %s210, 256, 128, 8
        $region28: #{addmm.1} parent=19 // pred_fallthru
          _
      $region20: #{addmm.1} parent=5 // pred_fallthru
        _
      %p233 = scmp.le.s32.totalorder 1, %s16
      %p234 = scmp.lt.s32.totalorder %s16, 3
      %p235 = pnand %p233, %p234
      %p236 = pneg %p235
      // Predicated region
      $region29: #{addmm.1} parent=5 // pred_check
        _
      $region30: #{addmm.1} parent=5 // pred_check_branch
        %238 = sbr.rel (%p235) target = $region32
      $region31: #{addmm.1} parent=5 // pred_region
        %s239 = ssub.s32 %s16, 1
        %s240 = sand.u32 %s21, 1
        %s241 = scalar_lea.sflag [#allocation3], %s240
        %s242 = sand.u32 %s50, 1
        %s243 = smul.addr %s242, 16
        %s244 = scalar_lea.vmem [#allocation2], %s243
        // Predicated region
        $region33: #{addmm.1} parent=31 // pred_check
          %p245 = pneg %p63
        $region34: #{addmm.1} parent=31 // pred_check_branch
          %247 = sbr.rel (%p245) target = $region36
        $region35: #{addmm.1} parent=31 // pred_region
          %248 = dma.done %s241, 256
        $region36: #{addmm.1} parent=31 // pred_fallthru
          _
        // Predicated region
        $region37: #{addmm.1} parent=31 // pred_check
          %p249 = pneg %p91
        $region38: #{addmm.1} parent=31 // pred_check_branch
          %251 = sbr.rel (%p249) target = $region40
        $region39: #{addmm.1} parent=31 // pred_region
          %252 = dma.done [#allocation6], 256
        $region40: #{addmm.1} parent=31 // pred_fallthru
          _
        %s253 = sand.u32 %s21, 1
        %s254 = scalar_lea.sflag [#allocation3], %s253
        %s255 = sand.u32 %s106, 1
        %s256 = smul.addr %s255, 128
        %s257 = scalar_lea.vmem [#allocation7], %s256
        // Predicated region
        $region41: #{addmm.1} parent=31 // pred_check
          %p258 = pneg %p119
        $region42: #{addmm.1} parent=31 // pred_check_branch
          %260 = sbr.rel (%p258) target = $region44
        $region43: #{addmm.1} parent=31 // pred_region
          %261 = dma.done %s254, 2048
        $region44: #{addmm.1} parent=31 // pred_fallthru
          _
        %s262 = sand.u32 %s21, 1
        %s263 = scalar_lea.sflag [#allocation3], %s262
        %s264 = sand.u32 %s50, 1
        %s265 = smul.addr %s264, 16
        %s266 = scalar_lea.vmem [#allocation2], %s265
        %p267 = pneg %p63
        %p268 = pneg %p60
        %p269 = pneg %p91
        %p270 = pneg %p88
        %s271 = sand.u32 %s21, 1
        %s272 = scalar_lea.sflag [#allocation3], %s271
        %s273 = sand.u32 %s106, 1
        %s274 = smul.addr %s273, 128
        %s275 = scalar_lea.vmem [#allocation7], %s274
        %p276 = pneg %p119
        %p277 = pneg %p116
        %p278 = pneg %p147
        %p279 = pneg %p144
        %s280 = sand.u32 %s134, 1
        %s281 = scalar_lea.sflag [#allocation4], %s280
        %s282 = sand.u32 %s134, 1
        %s283 = smul.addr %s282, 16
        %s284 = scalar_lea.vmem [#allocation8], %s283
        %s285 = smul.u32 2, %s26
        %s286 = smul.u32 2, %s26
        %s287 = smul.u32 16, %s28
        %s288 = ssub.s32 4, %s287
        %s289 = smul.u32 128, %s288
        %s290 = smul.u32 2, %s26
        %v291 = vld [vmem:[#allocation5] sm:$0xff]
        %v292 = vld [vmem:[#allocation5 + $0x8] sm:$0xff]
        %v293 = vld [vmem:[%s257] sm:$0xff]
        %v294 = vld [vmem:[%s257 + $0x8] sm:$0xff]
        %v295 = vld [vmem:[%s257 + $0x10] sm:$0xff]
        %v296 = vld [vmem:[%s257 + $0x18] sm:$0xff]
        %v297 = vld [vmem:[%s257 + $0x20] sm:$0xff]
        %v298 = vld [vmem:[%s257 + $0x28] sm:$0xff]
        %v299 = vld [vmem:[%s257 + $0x30] sm:$0xff]
        %v300 = vld [vmem:[%s257 + $0x38] sm:$0xff]
        %v301 = vld [vmem:[%s257 + $0x40] sm:$0xff]
        %v302 = vld [vmem:[%s257 + $0x48] sm:$0xff]
        %v303 = vld [vmem:[%s257 + $0x50] sm:$0xff]
        %v304 = vld [vmem:[%s257 + $0x58] sm:$0xff]
        %v305 = vld [vmem:[%s257 + $0x60] sm:$0xff]
        %v306 = vld [vmem:[%s257 + $0x68] sm:$0xff]
        %v307 = vld [vmem:[%s257 + $0x70] sm:$0xff]
        %v308 = vld [vmem:[%s257 + $0x78] sm:$0xff]
        %s309 = smul.u32 %s28, 128
        %s310 = ssub.s32 32, %s309
        %v311 = vlaneseq
        %v312 = vand.u32 %v311, 127
        %v313 = vstv %s310
        %vm314 = vcmp.lt.s32.totalorder %v312, %v313
        %v315 = vsel %vm314, %v291, 0.0
        %v316 = vsel %vm314, %v292, 0.0
        %v317 = vlaneseq
        %v318 = vshrl.u32 %v317, 7
        %v319 = vadd.s32 %v318, 8
        %v320 = vadd.s32 %v318, 16
        %v321 = vadd.s32 %v318, 24
        %v322 = vadd.s32 %v318, 32
        %v323 = vadd.s32 %v318, 40
        %v324 = vadd.s32 %v318, 48
        %v325 = vadd.s32 %v318, 56
        %v326 = vadd.s32 %v318, 64
        %v327 = vadd.s32 %v318, 72
        %v328 = vadd.s32 %v318, 80
        %v329 = vadd.s32 %v318, 88
        %v330 = vadd.s32 %v318, 96
        %v331 = vadd.s32 %v318, 104
        %v332 = vadd.s32 %v318, 112
        %v333 = vadd.s32 %v318, 120
        %vm334 = vcmp.lt.s32.totalorder %v318, %v313
        %vm335 = vcmp.lt.s32.totalorder %v319, %v313
        %vm336 = vcmp.lt.s32.totalorder %v320, %v313
        %vm337 = vcmp.lt.s32.totalorder %v321, %v313
        %vm338 = vcmp.lt.s32.totalorder %v322, %v313
        %vm339 = vcmp.lt.s32.totalorder %v323, %v313
        %vm340 = vcmp.lt.s32.totalorder %v324, %v313
        %vm341 = vcmp.lt.s32.totalorder %v325, %v313
        %vm342 = vcmp.lt.s32.totalorder %v326, %v313
        %vm343 = vcmp.lt.s32.totalorder %v327, %v313
        %vm344 = vcmp.lt.s32.totalorder %v328, %v313
        %vm345 = vcmp.lt.s32.totalorder %v329, %v313
        %vm346 = vcmp.lt.s32.totalorder %v330, %v313
        %vm347 = vcmp.lt.s32.totalorder %v331, %v313
        %vm348 = vcmp.lt.s32.totalorder %v332, %v313
        %vm349 = vcmp.lt.s32.totalorder %v333, %v313
        %v350 = vsel %vm334, %v293, 0.0
        %v351 = vsel %vm335, %v294, 0.0
        %v352 = vsel %vm336, %v295, 0.0
        %v353 = vsel %vm337, %v296, 0.0
        %v354 = vsel %vm338, %v297, 0.0
        %v355 = vsel %vm339, %v298, 0.0
        %v356 = vsel %vm340, %v299, 0.0
        %v357 = vsel %vm341, %v300, 0.0
        %v358 = vsel %vm342, %v301, 0.0
        %v359 = vsel %vm343, %v302, 0.0
        %v360 = vsel %vm344, %v303, 0.0
        %v361 = vsel %vm345, %v304, 0.0
        %v362 = vsel %vm346, %v305, 0.0
        %v363 = vsel %vm347, %v306, 0.0
        %v364 = vsel %vm348, %v307, 0.0
        %v365 = vsel %vm349, %v308, 0.0
        %366 = vmatprep.subr.mxu0 0.0
        %367 = vmatpush1.msra.mxu0 %v350
        %368 = vmatprep.subr.mxu0 0.0
        %369 = vmatpush1.msra.mxu0 %v351
        %370 = vmatprep.subr.mxu0 0.0
        %371 = vmatpush1.msra.mxu0 %v352
        %372 = vmatprep.subr.mxu0 0.0
        %373 = vmatpush1.msra.mxu0 %v353
        %374 = vmatprep.subr.mxu0 0.0
        %375 = vmatpush1.msra.mxu0 %v354
        %376 = vmatprep.subr.mxu0 0.0
        %377 = vmatpush1.msra.mxu0 %v355
        %378 = vmatprep.subr.mxu0 0.0
        %379 = vmatpush1.msra.mxu0 %v356
        %380 = vmatprep.subr.mxu0 0.0
        %381 = vmatpush1.msra.mxu0 %v357
        %382 = vmatprep.subr.mxu0 0.0
        %383 = vmatpush1.msra.mxu0 %v358
        %384 = vmatprep.subr.mxu0 0.0
        %385 = vmatpush1.msra.mxu0 %v359
        %386 = vmatprep.subr.mxu0 0.0
        %387 = vmatpush1.msra.mxu0 %v360
        %388 = vmatprep.subr.mxu0 0.0
        %389 = vmatpush1.msra.mxu0 %v361
        %390 = vmatprep.subr.mxu0 0.0
        %391 = vmatpush1.msra.mxu0 %v362
        %392 = vmatprep.subr.mxu0 0.0
        %393 = vmatpush1.msra.mxu0 %v363
        %394 = vmatprep.subr.mxu0 0.0
        %395 = vmatpush1.msra.mxu0 %v364
        %396 = vmatprep.subr.mxu0 0.0
        %397 = vmatpush1.msra.mxu0 %v365
        %398 = vmatprep.subr.mxu0 0.0
        %399 = vmatpush1.msra.mxu0 0.0
        %400 = vmatprep.subr.mxu0 0.0
        %401 = vmatpush1.msra.mxu0 0.0
        %402 = vmatprep.subr.mxu0 0.0
        %403 = vmatpush1.msra.mxu0 0.0
        %404 = vmatprep.subr.mxu0 0.0
        %405 = vmatpush1.msra.mxu0 0.0
        %406 = vmatprep.subr.mxu0 0.0
        %407 = vmatpush1.msra.mxu0 0.0
        %408 = vmatprep.subr.mxu0 0.0
        %409 = vmatpush1.msra.mxu0 0.0
        %410 = vmatprep.subr.mxu0 0.0
        %411 = vmatpush1.msra.mxu0 0.0
        %412 = vmatprep.subr.mxu0 0.0
        %413 = vmatpush1.msra.mxu0 0.0
        %414 = vmatprep.subr.mxu0 0.0
        %415 = vmatpush1.msra.mxu0 0.0
        %416 = vmatprep.subr.mxu0 0.0
        %417 = vmatpush1.msra.mxu0 0.0
        %418 = vmatprep.subr.mxu0 0.0
        %419 = vmatpush1.msra.mxu0 0.0
        %420 = vmatprep.subr.mxu0 0.0
        %421 = vmatpush1.msra.mxu0 0.0
        %422 = vmatprep.subr.mxu0 0.0
        %423 = vmatpush1.msra.mxu0 0.0
        %424 = vmatprep.subr.mxu0 0.0
        %425 = vmatpush1.msra.mxu0 0.0
        %426 = vmatprep.subr.mxu0 0.0
        %427 = vmatpush1.msra.mxu0 0.0
        %428 = vmatprep.subr.mxu0 0.0
        %429 = vmatpush1.msra.mxu0 0.0
        %430 = vmatprep.mubr.f32.mxu0 0.0
        %431 = vmatmul.mubr.f32.gmra.mrb[0].mxu0 %v315
        %v432 = vpop.f32.mrb[0].mxu0
        %v433 = vadd.f32 0.0, %v432
        %v434 = vpop.f32.mrb[0].mxu0
        %435 = vmatprep.mubr.f32.mxu0 0.0
        %436 = vmatmul.mubr.f32.gmra.mrb[0].mxu0 %v316
        %v437 = vpop.f32.mrb[0].mxu0
        %v438 = vadd.f32 0.0, %v437
        %v439 = vpop.f32.mrb[0].mxu0
        %440 = vdwg.mxu0
        %p441 = scmp.eq.s32.totalorder %s28, 0
        // Predicated region
        $region45: #{addmm.1} parent=31 // pred_check
          %p442 = pneg %p441
        $region46: #{addmm.1} parent=31 // pred_check_branch
          %444 = sbr.rel (%p442) target = $region48
        $region47: #{addmm.1} parent=31 // pred_region
          %445 = vst [vmem:[%s284] sm:$0xff] %v433
          %446 = vst [vmem:[%s284 + $0x8] sm:$0xff] %v438
        $region48: #{addmm.1} parent=31 // pred_fallthru
          _
        %p447 = scmp.ne.s32.totalorder %s28, 0
        // Predicated region
        $region49: #{addmm.1} parent=31 // pred_check
          %p448 = pneg %p447
        $region50: #{addmm.1} parent=31 // pred_check_branch
          %450 = sbr.rel (%p448) target = $region52
        $region51: #{addmm.1} parent=31 // pred_region
          %v451 = vld [vmem:[%s284] sm:$0xff]
          %v452 = vld [vmem:[%s284 + $0x8] sm:$0xff]
          %v453 = vadd.f32 %v451, %v433
          %v454 = vadd.f32 %v452, %v438
          %455 = vst [vmem:[%s284] sm:$0xff] %v453
          %456 = vst [vmem:[%s284 + $0x8] sm:$0xff] %v454
        $region52: #{addmm.1} parent=31 // pred_fallthru
          _
        // Predicated region
        $region53: #{addmm.1} parent=31 // pred_check
          %p457 = pneg %p441
        $region54: #{addmm.1} parent=31 // pred_check_branch
          %459 = sbr.rel (%p457) target = $region56
        $region55: #{addmm.1} parent=31 // pred_region
          %v460 = vld [vmem:[%s284] sm:$0xff]
          %v461 = vld [vmem:[%s284 + $0x8] sm:$0xff]
          %v462 = vmul.f32 %v460, 2.0
          %v463 = vmul.f32 %v461, 2.0
          %v464 = vld [vmem:[%s244] sm:$0xff]
          %v465 = vld [vmem:[%s244 + $0x8] sm:$0xff]
          %v466 = vmul.f32 %v464, 0.5
          %v467 = vmul.f32 %v465, 0.5
          %v468 = vadd.f32 %v462, %v466
          %v469 = vadd.f32 %v463, %v467
          %470 = vst [vmem:[%s284] sm:$0xff] %v468
          %471 = vst [vmem:[%s284 + $0x8] sm:$0xff] %v469
        $region56: #{addmm.1} parent=31 // pred_fallthru
          _
        %s472 = sand.u32 %s134, 1
        %s473 = scalar_lea.sflag [#allocation4], %s472
        %s474 = sand.u32 %s134, 1
        %s475 = smul.addr %s474, 16
        %s476 = scalar_lea.vmem [#allocation8], %s475
        // Predicated region
        $region57: #{addmm.1} parent=31 // pred_check
          %p477 = pneg %p144
        $region58: #{addmm.1} parent=31 // pred_check_branch
          %479 = sbr.rel (%p477) target = $region60
        $region59: #{addmm.1} parent=31 // pred_region
          %s480 = smul.u32 2, %s26
          %s482 = ssub.s32 256, 256
          %483 = vsyncadd %s473, %s482
          %s484 = smul.addr %s480, 2
          %s485 = sadd.s32 %s27, %s484
          %s486 = smul.addr %s485, 128
          %s487 = scalar_lea.hbm %s3, %s486
          %s488 = sshll.u32 %s476, 4
          %s489 = int_to_ptr.vmem [resolvable:$true] %s488
          %494 = dma.vmem_to_hbm [thread:$0]  %s489, 256, %s487, %s473, 128, 256, 8
        $region60: #{addmm.1} parent=31 // pred_fallthru
          _
      $region32: #{addmm.1} parent=5 // pred_fallthru
        _
      %p495 = scmp.le.s32.totalorder 2, %s16
      // Predicated region
      $region61: #{addmm.1} parent=5 // pred_check
        %p496 = pneg %p495
      $region62: #{addmm.1} parent=5 // pred_check_branch
        %498 = sbr.rel (%p496) target = $region64
      $region63: #{addmm.1} parent=5 // pred_region
        %s499 = ssub.s32 %s16, 2
        // Predicated region
        $region65: #{addmm.1} parent=63 // pred_check
          %p500 = pneg %p150
        $region66: #{addmm.1} parent=63 // pred_check_branch
          %502 = sbr.rel (%p500) target = $region68
        $region67: #{addmm.1} parent=63 // pred_region
          %s503 = sand.u32 %s135, 1
          %s504 = scalar_lea.sflag [#allocation4], %s503
          %s505 = sand.u32 %s135, 1
          %s506 = smul.addr %s505, 16
          %s507 = scalar_lea.vmem [#allocation8], %s506
          %508 = dma.done %s504, 256
        $region68: #{addmm.1} parent=63 // pred_fallthru
          _
      $region64: #{addmm.1} parent=5 // pred_fallthru
        _
    $region6: #{addmm.1} parent=1 // loop_footer
      %s20 = sadd.s32 1, %s16
    $region7: #{addmm.1} parent=1 // loop_footer_branch
      %15 = sbr.rel target = $region3
    $region8: #{addmm.1} parent=1 // loop_exit
      _
    %509 = vsyncpa [#allocation3], 1
    %s510 = scalar_lea.sflag [#allocation3], 1
    %511 = vsyncpa %s510, 1
    %512 = vsyncpa [#allocation6], 1
    %513 = vsyncpa [#allocation4], 1
    %s514 = scalar_lea.sflag [#allocation4], 1
    %515 = vsyncpa %s514, 1

</llo_original>
